<compile_context>
chip_gen: v7x
topology: tpu7x:2x2x1
jax: 0.10.0
libtpu: 0.0.40
codegen_flags: <defaults>
</compile_context>

<pallas_src>
import functools

import jax
import jax.numpy as jnp
from jax.experimental import pallas as pl
from jax.experimental.pallas import tpu as pltpu


def _round_up(x, m):
    return ((x + m - 1) // m) * m


def _vmem_capacity_bytes():
    """Physical per-core VMEM; conservative (v7x, 64 MiB) fallback."""
    try:
        info = pltpu.get_tpu_info()
        cap = int(getattr(info, "vmem_capacity_bytes", 0))
        if cap > 0:
            return cap
    except Exception:
        pass
    return 64 * 1024 * 1024


def _tile_candidates(dim, cap):
    """Multiples of 128 that divide `dim` (dim is already 128-padded)."""
    cands = [t for t in range(128, min(dim, cap) + 1, 128) if dim % t == 0]
    return cands or [dim]


def _select_tiles(Bp, Kp, Np, emb_resident, tile_budget):
    """Largest (tk, tn) fitting the VMEM budget; keep >= 2 j tiles if possible."""
    tk_cands = _tile_candidates(Kp, 2048)
    tn_cands = _tile_candidates(Np, 2048)
    # Keep at least two tiles on the parallel j axis when N allows it, so a
    # v7x chip's two TensorCores both get work (near-free on 1-TC chips).
    two_j = [t for t in tn_cands if Np // t >= 2]
    if two_j:
        tn_cands = two_j

    def vmem_est(tk, tn):
        w = 2 * tk * tn * 2                              # double-buffered bf16 W
        a = 2 * Bp * (Kp if emb_resident else tk) * 2    # activation
        o = 2 * Bp * tn * 4                              # f32 output/accumulator
        b = 2 * 8 * tn * 4                               # bias (sublane-padded)
        return w + a + o + b

    best = None
    for tk in tk_cands:
        for tn in tn_cands:
            if vmem_est(tk, tn) > tile_budget:
                continue
            key = (tk * tn, tn)                          # max DMA/step, wide tn
            if best is None or key > best[0]:
                best = (key, tk, tn)
    if best is None:                                     # degenerate fallback
        tk, tn = tk_cands[0], tn_cands[0]
    else:
        _, tk, tn = best
    return tk, tn, vmem_est(tk, tn)


def _fc_kernel(emb_ref, w_ref, b_ref, o_ref, *, emb_resident):
    # emb_ref: (Kk, Bp, tk) bf16 resident  OR  (Bp, tk) bf16 streamed
    # w_ref:   (tk, tn) bf16     b_ref: (1, tn) f32
    # o_ref:   (Bp, tn) f32 -- block index constant across k, so the output
    #          block itself is the f32 accumulator (no VMEM scratch).
    k = pl.program_id(1)

    @pl.when(k == 0)
    def _():
        o_ref[...] = jnp.broadcast_to(b_ref[...], o_ref.shape)

    a = emb_ref[k] if emb_resident else emb_ref[...]
    o_ref[...] += jnp.dot(a, w_ref[...], preferred_element_type=jnp.float32)


def dialog_fc(emb_flat, w_t, bias):
    """emb_flat: (B, K) f32, w_t: (K, N) f32, bias: (N,) f32 -> (B, N) f32."""
    B, K = emb_flat.shape
    K2, N = w_t.shape
    assert K == K2

    # Pad: batch to a multiple of 16 (full bf16 vreg packing; the f32 output
    # keeps unmasked sublane-8 stores), K and N to multiples of 128 so tiles
    # never fall back to a whole (possibly VMEM-busting) dimension.
    Bp = max(16, _round_up(B, 16))
    Kp = _round_up(K, 128)
    Np = _round_up(N, 128)
    if (Bp, Kp) != (B, K):
        emb_flat = jnp.pad(emb_flat, ((0, Bp - B), (0, Kp - K)))
    if (Kp, Np) != (K, N):
        w_t = jnp.pad(w_t, ((0, Kp - K), (0, Np - N)))
    if Np != N:
        bias = jnp.pad(bias, (0, Np - N))

    # bf16 halves streamed weight bytes; accumulation stays f32 on the MXU.
    emb_bf = emb_flat.astype(jnp.bfloat16)
    w_bf = w_t.astype(jnp.bfloat16)
    bias2d = bias.reshape(1, Np).astype(jnp.float32)

    # Per-generation VMEM budget: ~48 MiB on v7x (64 MiB physical),
    # ~96 MiB on v5e/v6e (128 MiB); never below a 32 MiB floor.
    vmem_cap = _vmem_capacity_bytes()
    vmem_limit = max(32 << 20, int(0.75 * vmem_cap))
    tile_budget = vmem_limit - (4 << 20)          # headroom for compiler scratch

    # Hold the whole activation resident in VMEM when it is small (<= 4 MiB);
    # removes one DMA stream per reduction step and the per-j re-streaming.
    emb_resident = Bp * Kp * 2 <= (4 << 20)

    tk, tn, vmem_used = _select_tiles(Bp, Kp, Np, emb_resident, tile_budget)
    grid = (Np // tn, Kp // tk)

    if emb_resident:
        # (Kk, Bp, tk): slice k equals emb_flat[:, k*tk:(k+1)*tk]; DMA'd once.
        Kk = Kp // tk
        emb_in = jnp.transpose(emb_bf.reshape(Bp, Kk, tk), (1, 0, 2))
        emb_spec = pl.BlockSpec((Kk, Bp, tk), lambda j, k: (0, 0, 0))
    else:
        emb_in = emb_bf
        emb_spec = pl.BlockSpec((Bp, tk), lambda j, k: (0, k))

    act_bytes = Bp * Kp * 2 if emb_resident else (Np // tn) * Bp * Kp * 2
    cost = pl.CostEstimate(
        flops=2 * Bp * Kp * Np,
        transcendentals=0,
        bytes_accessed=Kp * Np * 2 + act_bytes + Bp * Np * 4 + Np * 4,
    )

    vmem_limit = int(min(max(vmem_limit, vmem_used + (4 << 20)),
                         max(32 << 20, int(0.9 * vmem_cap))))

    out = pl.pallas_call(
        functools.partial(_fc_kernel, emb_resident=emb_resident),
        out_shape=jax.ShapeDtypeStruct((Bp, Np), jnp.float32),
        grid_spec=pltpu.PrefetchScalarGridSpec(
            num_scalar_prefetch=0,
            grid=grid,
            in_specs=[
                # Activation: resident slab (index constant) or per-k stream.
                emb_spec,
                # Weight tile: the only big streaming input.
                # TODO(synk): sweep pipeline_mode=pl.Buffered(3) here once the
                # j-boundary DMA bubble shows up in the trace.
                pl.BlockSpec((tk, tn), lambda j, k: (k, j)),
                # Bias: block index constant across k -> no re-DMA in the loop.
                pl.BlockSpec((1, tn), lambda j, k: (0, j)),
            ],
            out_specs=pl.BlockSpec((Bp, tn), lambda j, k: (0, j)),
        ),
        compiler_params=pltpu.CompilerParams(
            dimension_semantics=("parallel", "arbitrary"),
            vmem_limit_bytes=vmem_limit,
        ),
        cost_estimate=cost,
    )(emb_in, w_bf, bias2d)

    return out[:B, :N]


@functools.partial(jax.jit, static_argnames=("max_len", "vocab_size"))
def simple_dialog_net_forward(x_ids, embed_table, w_t, bias, *, max_len,
                              vocab_size):
    """Full forward pass. x_ids: (B, L) int32 token ids."""
    B = x_ids.shape[0]
    # TODO(synk): fuse this gather into the pallas_call via scalar-prefetched
    # token ids + manual embedding-row DMA to skip one HBM round trip of the
    # (B, L*H) activation; kept as plain-JAX glue here.
    emb = jnp.take(embed_table, x_ids, axis=0)          # (B, L, H)
    emb_flat = emb.reshape(B, -1)                        # (B, L*H)
    out = dialog_fc(emb_flat, w_t, bias)                 # (B, L*V)
    return out.reshape(B, max_len, vocab_size)           # (B, L, V)


if __name__ == "__main__":
    # Small, module-consistent shapes.
    vocab_size = 16
    max_len = 8
    hidden_size = 32
    batch = 2

    K = max_len * hidden_size      # 256
    N = max_len * vocab_size       # 128

    key = jax.random.PRNGKey(0)
    k_emb, k_w, k_b, k_x = jax.random.split(key, 4)

    # Deterministic parameter init (synthetic, not a checkpoint).
    embed_table = jax.random.normal(k_emb, (vocab_size, hidden_size), jnp.float32)
    # PyTorch Linear stores weight as (N, K); pre-transpose to (K, N).
    w = jax.random.normal(k_w, (N, K), jnp.float32) * 0.05
    w_t = w.T
    bias = jax.random.normal(k_b, (N,), jnp.float32) * 0.05

    # Token-id input.
    x_ids = jax.random.randint(k_x, (batch, max_len), 0, vocab_size, jnp.int32)

    out = simple_dialog_net_forward(
        x_ids, embed_table, w_t, bias, max_len=max_len, vocab_size=vocab_size
    )
    out = jax.block_until_ready(out)

    # Reference checks in plain JAX.
    emb_ref = jnp.take(embed_table, x_ids, axis=0).reshape(batch, -1)
    # (a) same bf16 input rounding as the kernel, f32 accumulate -> tight check
    ref_bf = (
        emb_ref.astype(jnp.bfloat16).astype(jnp.float32)
        @ w_t.astype(jnp.bfloat16).astype(jnp.float32)
        + bias
    ).reshape(batch, max_len, vocab_size)
    # (b) pure f32 reference -> loose check (bf16 input rounding)
    ref_f32 = (emb_ref @ w_t + bias).reshape(batch, max_len, vocab_size)

    assert out.shape == (batch, max_len, vocab_size)
    assert jnp.allclose(out, ref_bf, atol=2e-3, rtol=2e-3), "bf16-ref mismatch"
    assert jnp.allclose(out, ref_f32, atol=5e-2, rtol=5e-2), "f32-ref mismatch"

    print("KERNEL_OK")
</pallas_src>

<mosaic_0001>
module attributes {stable_mosaic.version = 11 : i64} {
  func.func @_fc_kernel(%arg0: i32, %arg1: i32, %arg2: memref<1x16x256xbf16, #tpu.memory_space<vmem>>, %arg3: memref<256x128xbf16, #tpu.memory_space<vmem>>, %arg4: memref<1x128xf32, #tpu.memory_space<vmem>>, %arg5: memref<16x128xf32, #tpu.memory_space<vmem>>) attributes {dimension_semantics = [#tpu.dimension_semantics<parallel>, #tpu.dimension_semantics<arbitrary>], iteration_bounds = array<i64: 1, 1>, scalar_prefetch = 0 : i64, scratch_operands = 0 : i64, tpu.core_type = #tpu.core_type<tc>, window_params = [{pipeline_mode = #tpu.pipeline_mode<synchronous>, transform_indices = @transform_0, window_bounds = array<i64: 1, 16, 256>}, {transform_indices = @transform_1, window_bounds = array<i64: 256, 128>}, {transform_indices = @transform_2, window_bounds = array<i64: 1, 128>}, {transform_indices = @transform_3, window_bounds = array<i64: 16, 128>}]} {
    %c0_i32 = arith.constant 0 : i32
    %0 = arith.cmpi eq, %arg1, %c0_i32 : i32
    %1 = arith.extui %0 : i1 to i32
    %c0_i32_0 = arith.constant 0 : i32
    %2 = arith.cmpi ne, %1, %c0_i32_0 : i32
    scf.if %2 {
      %c0_8 = arith.constant 0 : index
      %c0_9 = arith.constant 0 : index
      %11 = vector.load %arg4[%c0_8, %c0_9] : memref<1x128xf32, #tpu.memory_space<vmem>>, vector<1x128xf32>
      %12 = vector.shape_cast %11 : vector<1x128xf32> to vector<1x128xf32>
      %13 = vector.broadcast %12 : vector<1x128xf32> to vector<16x128xf32>
      %c0_10 = arith.constant 0 : index
      %c0_11 = arith.constant 0 : index
      %14 = vector.load %arg5[%c0_10, %c0_11] : memref<16x128xf32, #tpu.memory_space<vmem>>, vector<16x128xf32>
      tpu.vector_store %arg5[%c0_10, %c0_11], %13 {strides = array<i32>} : memref<16x128xf32, #tpu.memory_space<vmem>>, vector<16x128xf32>,
    } else {
    }
    %3 = arith.index_cast %arg1 : i32 to index
    %c0 = arith.constant 0 : index
    %c0_1 = arith.constant 0 : index
    %4 = vector.load %arg2[%3, %c0, %c0_1] : memref<1x16x256xbf16, #tpu.memory_space<vmem>>, vector<1x16x256xbf16>
    %5 = vector.shape_cast %4 : vector<1x16x256xbf16> to vector<16x256xbf16>
    %c0_2 = arith.constant 0 : index
    %c0_3 = arith.constant 0 : index
    %6 = vector.load %arg5[%c0_2, %c0_3] : memref<16x128xf32, #tpu.memory_space<vmem>>, vector<16x128xf32>
    %c0_4 = arith.constant 0 : index
    %c0_5 = arith.constant 0 : index
    %7 = vector.load %arg3[%c0_4, %c0_5] : memref<256x128xbf16, #tpu.memory_space<vmem>>, vector<256x128xbf16>
    %cst = arith.constant dense<0.000000e+00> : vector<16x128xf32>
    %8 = tpu.matmul %5, %7, %cst {dimension_numbers = #tpu.dot_dimension_numbers<[1], [0], [0], [1], [0, 0, 1, 1], [], []>} : vector<16x256xbf16>, vector<256x128xbf16>, vector<16x128xf32> -> vector<16x128xf32>
    %9 = arith.addf %6, %8 : vector<16x128xf32>
    %c0_6 = arith.constant 0 : index
    %c0_7 = arith.constant 0 : index
    %10 = vector.load %arg5[%c0_6, %c0_7] : memref<16x128xf32, #tpu.memory_space<vmem>>, vector<16x128xf32>
    tpu.vector_store %arg5[%c0_6, %c0_7], %9 {strides = array<i32>} : memref<16x128xf32, #tpu.memory_space<vmem>>, vector<16x128xf32>,
    return
  }
  func.func @transform_0(%arg0: i32, %arg1: i32) -> (i32, i32, i32) {
    %c0_i32 = arith.constant 0 : i32
    %c0_i32_0 = arith.constant 0 : i32
    %c0_i32_1 = arith.constant 0 : i32
    %c0_i32_2 = arith.constant 0 : i32
    return %c0_i32, %c0_i32_0, %c0_i32_1 : i32, i32, i32
  }
  func.func @transform_1(%arg0: i32, %arg1: i32) -> (i32, i32) {
    %c0_i32 = arith.constant 0 : i32
    return %arg1, %arg0 : i32, i32
  }
  func.func @transform_2(%arg0: i32, %arg1: i32) -> (i32, i32) {
    %c0_i32 = arith.constant 0 : i32
    %c0_i32_0 = arith.constant 0 : i32
    return %c0_i32, %arg0 : i32, i32
  }
  func.func @transform_3(%arg0: i32, %arg1: i32) -> (i32, i32) {
    %c0_i32 = arith.constant 0 : i32
    %c0_i32_0 = arith.constant 0 : i32
    return %c0_i32, %arg0 : i32, i32
  }
}

</mosaic_0001>

<llo_original>
// kernel: simple_dialog_net_forward.1
$region0: #{simple_dialog_net_forward.1}
  #allocation0 [shape = 'u32[]', space=smem, size = 0x4, offset = 0x4, fixed_abs, tag = 'smem constant byte address 0x4 - core index']
  #allocation1 [shape = 'u32[144,128]{1,0:T(1,128)}', space=vmem, size = 0x12000, scoped, tag = 'internal scratch']
  %s0 = inlined_call_operand.vmem [shape: bf16[1,16,256], index: 0, kind: input, shape index: {}]
  %s1 = inlined_call_operand.vmem [shape: bf16[256,128], index: 1, kind: input, shape index: {}]
  %s2 = inlined_call_operand.vmem [shape: f32[1,128], index: 2, kind: input, shape index: {}]
  %s3 = inlined_call_operand.vmem [shape: f32[16,128], index: 3, kind: output, shape index: {}]
  %s4 = sld [smem:[#allocation0]]
  $region26: #{simple_dialog_net_forward.1} parent=0
    _
  %s6 = ssub.s32 1, %s4
  %s7 = scalar_select 0, %s6, %s4
  // Predicated region
  $region2: #{simple_dialog_net_forward.1} parent=0 // pred_check
    _
  $region3: #{simple_dialog_net_forward.1} parent=0 // pred_check_branch
    %9 = sbr.rel (0) target = $region5
  $region4: #{simple_dialog_net_forward.1} parent=0 // pred_region
    _
  $region5: #{simple_dialog_net_forward.1} parent=0 // pred_fallthru
    _
  // Predicated region
  $region6: #{simple_dialog_net_forward.1} parent=0 // pred_check
    _
  $region7: #{simple_dialog_net_forward.1} parent=0 // pred_check_branch
    %11 = sbr.rel (0) target = $region9
  $region8: #{simple_dialog_net_forward.1} parent=0 // pred_region
    _
  $region9: #{simple_dialog_net_forward.1} parent=0 // pred_fallthru
    _
  // Predicated region
  $region10: #{simple_dialog_net_forward.1} parent=0 // pred_check
    _
  $region11: #{simple_dialog_net_forward.1} parent=0 // pred_check_branch
    %13 = sbr.rel (0) target = $region13
  $region12: #{simple_dialog_net_forward.1} parent=0 // pred_region
    _
  $region13: #{simple_dialog_net_forward.1} parent=0 // pred_fallthru
    _
  %p15 = scmp.eq.s32.totalorder 0, 0
  // Predicated region
  $region14: #{simple_dialog_net_forward.1} parent=0 // pred_check
    %p16 = pneg %p15
  $region15: #{simple_dialog_net_forward.1} parent=0 // pred_check_branch
    %18 = sbr.rel (%p16) target = $region17
  $region16: #{simple_dialog_net_forward.1} parent=0 // pred_region
    %v19 = vld [vmem:[%s2] sm:$0x1]
    %v21 = vlaneseq
    %v22 = vshrl.u32 %v21, 7
    %v23 = vsub.s32 0, %v22
    %v24 = vrot.slane %v19, %v23
    %26 = vst [vmem:[%s3] sm:$0xff] %v24
    %27 = vst [vmem:[%s3 + $0x8] sm:$0xff] %v24
  $region17: #{simple_dialog_net_forward.1} parent=0 // pred_fallthru
    _
  %s28 = smul.u32 0, 4
  %s29 = smul.addr %s28, 4
  %s30 = scalar_lea.vmem %s0, %s29
  %v31 = vld [vmem:[%s30] sm:$0xff]
  %v32 = vld [vmem:[%s30 + $0x8] sm:$0xff]
  %v33 = vld [vmem:[%s3] sm:$0xff]
  %v34 = vld [vmem:[%s3 + $0x8] sm:$0xff]
  %v35 = vld [vmem:[%s1] sm:$0xf]
  %v36 = vld [vmem:[%s1 + $0x4] sm:$0xf]
  %v37 = vld [vmem:[%s1 + $0x8] sm:$0xf]
  %v38 = vld [vmem:[%s1 + $0xc] sm:$0xf]
  %v39 = vld [vmem:[%s1 + $0x10] sm:$0xf]
  %v40 = vld [vmem:[%s1 + $0x14] sm:$0xf]
  %v41 = vld [vmem:[%s1 + $0x18] sm:$0xf]
  %v42 = vld [vmem:[%s1 + $0x1c] sm:$0xf]
  %v43 = vld [vmem:[%s1 + $0x20] sm:$0xf]
  %v44 = vld [vmem:[%s1 + $0x24] sm:$0xf]
  %v45 = vld [vmem:[%s1 + $0x28] sm:$0xf]
  %v46 = vld [vmem:[%s1 + $0x2c] sm:$0xf]
  %v47 = vld [vmem:[%s1 + $0x30] sm:$0xf]
  %v48 = vld [vmem:[%s1 + $0x34] sm:$0xf]
  %v49 = vld [vmem:[%s1 + $0x38] sm:$0xf]
  %v50 = vld [vmem:[%s1 + $0x3c] sm:$0xf]
  %v51 = vld [vmem:[%s1 + $0x40] sm:$0xf]
  %v52 = vld [vmem:[%s1 + $0x44] sm:$0xf]
  %v53 = vld [vmem:[%s1 + $0x48] sm:$0xf]
  %v54 = vld [vmem:[%s1 + $0x4c] sm:$0xf]
  %v55 = vld [vmem:[%s1 + $0x50] sm:$0xf]
  %v56 = vld [vmem:[%s1 + $0x54] sm:$0xf]
  %v57 = vld [vmem:[%s1 + $0x58] sm:$0xf]
  %v58 = vld [vmem:[%s1 + $0x5c] sm:$0xf]
  %v59 = vld [vmem:[%s1 + $0x60] sm:$0xf]
  %v60 = vld [vmem:[%s1 + $0x64] sm:$0xf]
  %v61 = vld [vmem:[%s1 + $0x68] sm:$0xf]
  %v62 = vld [vmem:[%s1 + $0x6c] sm:$0xf]
  %v63 = vld [vmem:[%s1 + $0x70] sm:$0xf]
  %v64 = vld [vmem:[%s1 + $0x74] sm:$0xf]
  %v65 = vld [vmem:[%s1 + $0x78] sm:$0xf]
  %v66 = vld [vmem:[%s1 + $0x7c] sm:$0xf]
  %v69 = vunpack.c.l.b16 %v31
  %v70 = vunpack.c.h.b16 %v31
  %v71 = vunpack.c.l.b16 %v32
  %v72 = vunpack.c.h.b16 %v32
  %v73 = vpack.c.b16 %v71, %v69
  %v74 = vpack.c.b16 %v72, %v70
  %v109 = vunpack.c.l.b16 %v35
  %v110 = vunpack.c.l.b16 %v36
  %v111 = vunpack.c.l.b16 %v37
  %v112 = vunpack.c.l.b16 %v38
  %v113 = vunpack.c.l.b16 %v39
  %v114 = vunpack.c.l.b16 %v40
  %v115 = vunpack.c.l.b16 %v41
  %v116 = vunpack.c.l.b16 %v42
  %v117 = vunpack.c.l.b16 %v43
  %v118 = vunpack.c.l.b16 %v44
  %v119 = vunpack.c.l.b16 %v45
  %v120 = vunpack.c.l.b16 %v46
  %v121 = vunpack.c.l.b16 %v47
  %v122 = vunpack.c.l.b16 %v48
  %v123 = vunpack.c.l.b16 %v49
  %v124 = vunpack.c.l.b16 %v50
  %v125 = vunpack.c.l.b16 %v51
  %v126 = vunpack.c.l.b16 %v52
  %v127 = vunpack.c.l.b16 %v53
  %v128 = vunpack.c.l.b16 %v54
  %v129 = vunpack.c.l.b16 %v55
  %v130 = vunpack.c.l.b16 %v56
  %v131 = vunpack.c.l.b16 %v57
  %v132 = vunpack.c.l.b16 %v58
  %v133 = vunpack.c.l.b16 %v59
  %v134 = vunpack.c.l.b16 %v60
  %v135 = vunpack.c.l.b16 %v61
  %v136 = vunpack.c.l.b16 %v62
  %v137 = vunpack.c.l.b16 %v63
  %v138 = vunpack.c.l.b16 %v64
  %v139 = vunpack.c.l.b16 %v65
  %v140 = vunpack.c.l.b16 %v66
  %v141 = vpack.c.b16 %v110, %v109
  %v142 = vpack.c.b16 %v112, %v111
  %v143 = vpack.c.b16 %v114, %v113
  %v144 = vpack.c.b16 %v116, %v115
  %v145 = vpack.c.b16 %v118, %v117
  %v146 = vpack.c.b16 %v120, %v119
  %v147 = vpack.c.b16 %v122, %v121
  %v148 = vpack.c.b16 %v124, %v123
  %v149 = vpack.c.b16 %v126, %v125
  %v150 = vpack.c.b16 %v128, %v127
  %v151 = vpack.c.b16 %v130, %v129
  %v152 = vpack.c.b16 %v132, %v131
  %v153 = vpack.c.b16 %v134, %v133
  %v154 = vpack.c.b16 %v136, %v135
  %v155 = vpack.c.b16 %v138, %v137
  %v156 = vpack.c.b16 %v140, %v139
  %173 = vmatprep.subr.bf16.mxu0 0
  %174 = vmatpush1.bf16.msra.mxu0 %v141
  %175 = vmatprep.subr.bf16.mxu0 0
  %176 = vmatpush1.bf16.msra.mxu0 %v142
  %177 = vmatprep.subr.bf16.mxu0 0
  %178 = vmatpush1.bf16.msra.mxu0 %v143
  %179 = vmatprep.subr.bf16.mxu0 0
  %180 = vmatpush1.bf16.msra.mxu0 %v144
  %181 = vmatprep.subr.bf16.mxu0 0
  %182 = vmatpush1.bf16.msra.mxu0 %v145
  %183 = vmatprep.subr.bf16.mxu0 0
  %184 = vmatpush1.bf16.msra.mxu0 %v146
  %185 = vmatprep.subr.bf16.mxu0 0
  %186 = vmatpush1.bf16.msra.mxu0 %v147
  %187 = vmatprep.subr.bf16.mxu0 0
  %188 = vmatpush1.bf16.msra.mxu0 %v148
  %189 = vmatprep.subr.bf16.mxu0 0
  %190 = vmatpush1.bf16.msra.mxu0 %v149
  %191 = vmatprep.subr.bf16.mxu0 0
  %192 = vmatpush1.bf16.msra.mxu0 %v150
  %193 = vmatprep.subr.bf16.mxu0 0
  %194 = vmatpush1.bf16.msra.mxu0 %v151
  %195 = vmatprep.subr.bf16.mxu0 0
  %196 = vmatpush1.bf16.msra.mxu0 %v152
  %197 = vmatprep.subr.bf16.mxu0 0
  %198 = vmatpush1.bf16.msra.mxu0 %v153
  %199 = vmatprep.subr.bf16.mxu0 0
  %200 = vmatpush1.bf16.msra.mxu0 %v154
  %201 = vmatprep.subr.bf16.mxu0 0
  %202 = vmatpush1.bf16.msra.mxu0 %v155
  %203 = vmatprep.subr.bf16.mxu0 0
  %204 = vmatpush1.bf16.msra.mxu0 %v156
  %205 = vmatprep.mubr.bf16.mxu0 %v74
  %206 = vmatmul.mubr.bf16.gmra.mrb[0].mxu0 %v73
  %v207 = vpop.f32.mrb[0].mxu0
  %v208 = vadd.f32 0.0, %v207
  %v209 = vpop.f32.mrb[0].mxu0
  %v210 = vpop.f32.mrb[0].mxu0
  %v211 = vadd.f32 0.0, %v210
  %v212 = vpop.f32.mrb[0].mxu0
  %213 = vdwg.mxu0
  %v214 = vadd.f32 %v33, %v208
  %v215 = vadd.f32 %v34, %v211
  %216 = vst [vmem:[%s3] sm:$0xff] %v214
  %217 = vst [vmem:[%s3 + $0x8] sm:$0xff] %v215
  // Predicated region
  $region18: #{simple_dialog_net_forward.1} parent=0 // pred_check
    _
  $region19: #{simple_dialog_net_forward.1} parent=0 // pred_check_branch
    %219 = sbr.rel (0) target = $region21
  $region20: #{simple_dialog_net_forward.1} parent=0 // pred_region
    _
  $region21: #{simple_dialog_net_forward.1} parent=0 // pred_fallthru
    _
  // Predicated region
  $region22: #{simple_dialog_net_forward.1} parent=0 // pred_check
    _
  $region23: #{simple_dialog_net_forward.1} parent=0 // pred_check_branch
    %221 = sbr.rel (0) target = $region25
  $region24: #{simple_dialog_net_forward.1} parent=0 // pred_region
    _
  $region25: #{simple_dialog_net_forward.1} parent=0 // pred_fallthru
    _

</llo_original>
